<compile_context>
chip_gen: v7x
topology: tpu7x:2x2x1
jax: 0.10.0
libtpu: 0.0.40
codegen_flags: <defaults>
</compile_context>

<pallas_src>
import math

import jax
import jax.numpy as jnp
from jax.experimental import pallas as pl
from jax.experimental.pallas import tpu as pltpu


def _round_up(x, m):
    return (x + m - 1) // m * m


def _select_tile_p(s_total, kp, dp, compute_bytes, out_bytes,
                   max_tp=512, budget_bytes=24 * 1024 * 1024):
    """Pick the sequence-tile size so the per-step VMEM working set (resident
    weight + double-buffered patch/output tiles) stays well under the scoped
    VMEM limit on every generation (incl. v7x's 64 MiB physical VMEM)."""
    def need(t):
        weight_resident = kp * dp * compute_bytes       # constant index_map -> resident
        patches_db = 2 * t * kp * compute_bytes         # double buffered input tile
        out_db = 2 * t * dp * out_bytes                 # double buffered output tile
        small = 8 * dp * out_bytes * 4                  # bias/registers/slack
        return weight_resident + patches_db + out_db + small

    tp = _round_up(min(max_tp, _round_up(s_total, 8)), 8)
    while tp > 8 and need(tp) > budget_bytes:
        tp -= 8
    return max(tp, 8)


# ----------------------------------------------------------------------------
# Pallas kernel: patch embedding (Conv2d-with-stride==kernel hot path) with
# the register rows fused into the output on the first sequence tile.
# ----------------------------------------------------------------------------
def _make_patch_embed_kernel(num_registers):
    if num_registers > 0:
        def kernel(p_ref, w_ref, b_ref, r_ref, o_ref):
            # p_ref: (TP, Kp)  patches tile (compute dtype, bf16 by default)
            # w_ref: (Kp, Dp)  flattened conv weight (compute dtype), VMEM-resident
            # b_ref: (1, Dp)   conv bias (f32)
            # r_ref: (R, Dp)   register tokens (f32)
            # o_ref: (TP, Dp)  output tile (f32)
            acc = jnp.dot(p_ref[...], w_ref[...],
                          preferred_element_type=jnp.float32)   # MXU, f32 accum
            o_ref[...] = (acc + b_ref[...]).astype(o_ref.dtype)

            # Registers occupy the first R rows of the sequence; write them on
            # the first P-tile of every batch element (replaces the former
            # jnp.concatenate HBM round trip).
            @pl.when(pl.program_id(1) == 0)
            def _():
                o_ref[0:num_registers, :] = r_ref[...].astype(o_ref.dtype)

        return kernel

    def kernel(p_ref, w_ref, b_ref, o_ref):
        acc = jnp.dot(p_ref[...], w_ref[...],
                      preferred_element_type=jnp.float32)
        o_ref[...] = (acc + b_ref[...]).astype(o_ref.dtype)

    return kernel


def patch_embed_tokens(patches, w_kd, bias, registers, *,
                       compute_dtype=jnp.bfloat16, interpret=False):
    """patches: (B, P, K) f32, w_kd: (K, D), bias: (D,), registers: (R, D)|None.

    Returns the full token sequence (B, R + P, D) f32:
      rows [0, R)    = registers (broadcast over batch)
      rows [R, R+P)  = patch embeddings (patches @ W + bias)
    """
    B, P, K = patches.shape
    K2, D = w_kd.shape
    assert K == K2
    R = 0 if registers is None else int(registers.shape[0])
    out_dtype = jnp.float32

    # Pad contraction and output feature dims to the 128-lane width
    # (full-width MXU, unmasked lane-dense stores).
    Kp = _round_up(K, 128)
    Dp = _round_up(D, 128)
    cbytes = jnp.dtype(compute_dtype).itemsize
    obytes = jnp.dtype(out_dtype).itemsize

    S = R + P                                   # true sequence length
    TP = _select_tile_p(S, Kp, Dp, cbytes, obytes)
    assert R <= TP, (R, TP)
    S_pad = _round_up(S, TP)
    grid = (B, S_pad // TP)

    # Glue padding / casts (fused by XLA with the patch-extraction producer).
    # Front-pad R dummy rows so output row s == register slot (s < R) or patch
    # s - R; tail-pad to a tile multiple; zero-pad K.
    patches_aug = jnp.pad(patches.astype(compute_dtype),
                          ((0, 0), (R, S_pad - S), (0, Kp - K)))
    w_pad = jnp.pad(w_kd, ((0, Kp - K), (0, Dp - D))).astype(compute_dtype)
    b_pad = jnp.pad(bias, (0, Dp - D)).reshape(1, Dp).astype(jnp.float32)

    in_specs = [
        # Squeezed leading batch dim -> kernel refs are 2-D.
        pl.BlockSpec((pl.Squeezed(), TP, Kp), lambda b, p: (b, p, 0)),
        # Constant index_map keeps the weight resident in VMEM across the grid.
        pl.BlockSpec((Kp, Dp), lambda b, p: (0, 0)),
        pl.BlockSpec((1, Dp), lambda b, p: (0, 0)),
    ]
    args = [patches_aug, w_pad, b_pad]
    if R > 0:
        regs_pad = jnp.pad(registers, ((0, 0), (0, Dp - D))).astype(jnp.float32)
        in_specs.append(pl.BlockSpec((R, Dp), lambda b, p: (0, 0)))
        args.append(regs_pad)

    cost = pl.CostEstimate(
        flops=int(2 * B * S_pad * Kp * Dp),
        transcendentals=0,
        bytes_accessed=int(B * S_pad * Kp * cbytes + Kp * Dp * cbytes
                           + Dp * obytes + R * Dp * obytes
                           + B * S_pad * Dp * obytes))

    out = pl.pallas_call(
        _make_patch_embed_kernel(R),
        out_shape=jax.ShapeDtypeStruct((B, S_pad, Dp), out_dtype),
        grid_spec=pltpu.PrefetchScalarGridSpec(
            num_scalar_prefetch=0,
            grid=grid,
            in_specs=in_specs,
            out_specs=pl.BlockSpec((pl.Squeezed(), TP, Dp),
                                   lambda b, p: (b, p, 0)),
        ),
        compiler_params=pltpu.CompilerParams(
            # Two parallel axes: batch and sequence tiles (megacore / v7x 2-TC).
            dimension_semantics=("parallel", "parallel"),
            # Explicit scoped-VMEM limit; tiles are budgeted to ~24 MiB, so 48 MiB
            # leaves headroom even on v7x (64 MiB physical per TC).
            vmem_limit_bytes=48 * 1024 * 1024),
        cost_estimate=cost,
        interpret=interpret,
    )(*args)

    # Drop the tail/seq padding and the D padding (no-op when already aligned).
    return out[:, :S, :D]


# ----------------------------------------------------------------------------
# ImageTokenizer forward (JAX glue around the Pallas kernel).
# ----------------------------------------------------------------------------
class ImageTokenizerParams:
    """Deterministically-initialized parameters matching the PyTorch module."""

    def __init__(self, key, embedding_dim, num_registers, patch_h, patch_w,
                 input_h, input_w, input_c):
        assert input_h % patch_h == 0
        assert input_w % patch_w == 0
        self.embedding_dim = embedding_dim
        self.num_registers = num_registers
        self.patch_h, self.patch_w = patch_h, patch_w
        self.input_h, self.input_w, self.input_c = input_h, input_w, input_c
        self.seq_length = (input_h // patch_h) * (input_w // patch_w) + num_registers

        k_w, k_b, k_r = jax.random.split(key, 3)
        fan_in = input_c * patch_h * patch_w
        bound = 1.0 / math.sqrt(fan_in)
        # Conv2d weight: (out_c, in_c, kh, kw); kaiming-uniform-like bounds.
        self.conv_w = jax.random.uniform(
            k_w, (embedding_dim, input_c, patch_h, patch_w),
            minval=-bound, maxval=bound, dtype=jnp.float32)
        self.conv_b = jax.random.uniform(
            k_b, (embedding_dim,), minval=-bound, maxval=bound,
            dtype=jnp.float32)
        # registers: randn(1, n, d) / sqrt(d)
        self.registers = (jax.random.normal(
            k_r, (1, num_registers, embedding_dim), dtype=jnp.float32)
            / math.sqrt(embedding_dim))
        # Precompute the flattened (K, D) weight once (no per-forward transpose).
        K = input_c * patch_h * patch_w
        self.w_kd = self.conv_w.reshape(embedding_dim, K).T            # (K, D)


def image_tokenizer_forward(params: ImageTokenizerParams, x, *,
                            compute_dtype=jnp.bfloat16, interpret=False):
    """x: (B, C, H, W) NCHW  ->  (B, seq_length, embedding_dim) f32."""
    B, C, H, W = x.shape
    ph, pw = params.patch_h, params.patch_w
    Hp, Wp = H // ph, W // pw
    K = C * ph * pw

    # Glue: extract non-overlapping patches, feature order (c, i, j).
    # TODO(synk): fuse this 6-D transpose into the kernel (deliver NCHW row
    # slabs per P-tile and rearrange in VMEM) to save one HBM round trip.
    patches = x.reshape(B, C, Hp, ph, Wp, pw)
    patches = jnp.transpose(patches, (0, 2, 4, 1, 3, 5))    # (B, Hp, Wp, C, ph, pw)
    patches = patches.reshape(B, Hp * Wp, K)                # (B, P, K)

    regs = params.registers[0] if params.num_registers > 0 else None
    return patch_embed_tokens(patches, params.w_kd, params.conv_b, regs,
                              compute_dtype=compute_dtype, interpret=interpret)


# ----------------------------------------------------------------------------
# Pure-JAX reference (conv via lax) for a sanity check.
# ----------------------------------------------------------------------------
def image_tokenizer_reference(params: ImageTokenizerParams, x):
    conv = jax.lax.conv_general_dilated(
        x, params.conv_w,
        window_strides=(params.patch_h, params.patch_w),
        padding="VALID",
        dimension_numbers=("NCHW", "OIHW", "NCHW"),
        precision=jax.lax.Precision.HIGHEST)
    conv = conv + params.conv_b[None, :, None, None]
    B, D, Hp, Wp = conv.shape
    tokens = jnp.moveaxis(conv.reshape(B, D, Hp * Wp), -1, -2)   # (B, P, D)
    regs = jnp.broadcast_to(params.registers,
                            (B, params.num_registers, D))
    return jnp.concatenate([regs, tokens], axis=1)


if __name__ == "__main__":
    key = jax.random.PRNGKey(0)
    k_param, k_x = jax.random.split(key)

    # Small shapes consistent with the module.
    B, C, H, W = 2, 4, 16, 16
    patch_h = patch_w = 4
    embedding_dim = 32
    num_registers = 2

    params = ImageTokenizerParams(
        k_param, embedding_dim, num_registers,
        patch_h, patch_w, H, W, C)

    x = jax.random.normal(k_x, (B, C, H, W), dtype=jnp.float32)

    ref = jax.block_until_ready(image_tokenizer_reference(params, x))
    expected_shape = (B, params.seq_length, embedding_dim)

    # Exact-precision path (f32 operands, f32 MXU accumulation).
    out_f32 = jax.block_until_ready(
        image_tokenizer_forward(params, x, compute_dtype=jnp.float32))
    assert out_f32.shape == expected_shape, (out_f32.shape, expected_shape)
    err_f32 = float(jnp.max(jnp.abs(out_f32 - ref)))
    assert jnp.allclose(out_f32, ref, atol=1e-4, rtol=1e-4), err_f32

    # Fast path (default): bf16 operands on the MXU, f32 accumulation.
    out_bf16 = jax.block_until_ready(
        image_tokenizer_forward(params, x, compute_dtype=jnp.bfloat16))
    assert out_bf16.shape == expected_shape, (out_bf16.shape, expected_shape)
    err_bf16 = float(jnp.max(jnp.abs(out_bf16 - ref)))
    assert jnp.allclose(out_bf16, ref, atol=3e-2, rtol=3e-2), err_bf16

    print("KERNEL_OK")
</pallas_src>

<mosaic_0001>
module attributes {stable_mosaic.version = 11 : i64} {
  func.func @kernel(%arg0: i32, %arg1: i32, %arg2: memref<1x24x128xf32, #tpu.memory_space<vmem>>, %arg3: memref<128x128xf32, #tpu.memory_space<vmem>>, %arg4: memref<1x128xf32, #tpu.memory_space<vmem>>, %arg5: memref<2x128xf32, #tpu.memory_space<vmem>>, %arg6: memref<1x24x128xf32, #tpu.memory_space<vmem>>) attributes {dimension_semantics = [#tpu.dimension_semantics<parallel>, #tpu.dimension_semantics<parallel>], iteration_bounds = array<i64: 2, 1>, scalar_prefetch = 0 : i64, scratch_operands = 0 : i64, tpu.core_type = #tpu.core_type<tc>, window_params = [{transform_indices = @transform_0, window_bounds = array<i64: 1, 24, 128>}, {pipeline_mode = #tpu.pipeline_mode<synchronous>, transform_indices = @transform_1, window_bounds = array<i64: 128, 128>}, {pipeline_mode = #tpu.pipeline_mode<synchronous>, transform_indices = @transform_2, window_bounds = array<i64: 1, 128>}, {pipeline_mode = #tpu.pipeline_mode<synchronous>, transform_indices = @transform_3, window_bounds = array<i64: 2, 128>}, {transform_indices = @transform_4, window_bounds = array<i64: 1, 24, 128>}]} {
    %c0 = arith.constant 0 : index
    %c0_0 = arith.constant 0 : index
    %c0_1 = arith.constant 0 : index
    %0 = vector.load %arg2[%c0, %c0_0, %c0_1] : memref<1x24x128xf32, #tpu.memory_space<vmem>>, vector<1x24x128xf32>
    %1 = vector.shape_cast %0 : vector<1x24x128xf32> to vector<24x128xf32>
    %c0_2 = arith.constant 0 : index
    %c0_3 = arith.constant 0 : index
    %2 = vector.load %arg3[%c0_2, %c0_3] : memref<128x128xf32, #tpu.memory_space<vmem>>, vector<128x128xf32>
    %cst = arith.constant dense<0.000000e+00> : vector<24x128xf32>
    %3 = tpu.matmul %1, %2, %cst {dimension_numbers = #tpu.dot_dimension_numbers<[1], [0], [0], [1], [0, 0, 1, 1], [], []>} : vector<24x128xf32>, vector<128x128xf32>, vector<24x128xf32> -> vector<24x128xf32>
    %c0_4 = arith.constant 0 : index
    %c0_5 = arith.constant 0 : index
    %4 = vector.load %arg4[%c0_4, %c0_5] : memref<1x128xf32, #tpu.memory_space<vmem>>, vector<1x128xf32>
    %5 = vector.broadcast %4 : vector<1x128xf32> to vector<24x128xf32>
    %6 = arith.addf %3, %5 : vector<24x128xf32>
    %c0_6 = arith.constant 0 : index
    %c0_7 = arith.constant 0 : index
    %c0_8 = arith.constant 0 : index
    %7 = vector.load %arg6[%c0_6, %c0_7, %c0_8] : memref<1x24x128xf32, #tpu.memory_space<vmem>>, vector<1x24x128xf32>
    %8 = vector.shape_cast %7 : vector<1x24x128xf32> to vector<24x128xf32>
    %9 = vector.shape_cast %6 : vector<24x128xf32> to vector<1x24x128xf32>
    tpu.vector_store %arg6[%c0_6, %c0_7, %c0_8], %9 {strides = array<i32>} : memref<1x24x128xf32, #tpu.memory_space<vmem>>, vector<1x24x128xf32>,
    %c0_i32 = arith.constant 0 : i32
    %10 = arith.cmpi eq, %arg1, %c0_i32 : i32
    %11 = arith.extui %10 : i1 to i32
    %c0_i32_9 = arith.constant 0 : i32
    %12 = arith.cmpi ne, %11, %c0_i32_9 : i32
    scf.if %12 {
      %c0_10 = arith.constant 0 : index
      %c0_11 = arith.constant 0 : index
      %13 = vector.load %arg5[%c0_10, %c0_11] : memref<2x128xf32, #tpu.memory_space<vmem>>, vector<2x128xf32>
      %c0_12 = arith.constant 0 : index
      %c0_13 = arith.constant 0 : index
      %c0_14 = arith.constant 0 : index
      %14 = vector.load %arg6[%c0_12, %c0_13, %c0_14] : memref<1x24x128xf32, #tpu.memory_space<vmem>>, vector<1x2x128xf32>
      %15 = vector.shape_cast %14 : vector<1x2x128xf32> to vector<2x128xf32>
      %16 = vector.shape_cast %13 : vector<2x128xf32> to vector<1x2x128xf32>
      tpu.vector_store %arg6[%c0_12, %c0_13, %c0_14], %16 {strides = array<i32>} : memref<1x24x128xf32, #tpu.memory_space<vmem>>, vector<1x2x128xf32>,
    } else {
    }
    return
  }
  func.func @transform_0(%arg0: i32, %arg1: i32) -> (i32, i32, i32) {
    %c0_i32 = arith.constant 0 : i32
    %c0_i32_0 = arith.constant 0 : i32
    return %arg0, %arg1, %c0_i32 : i32, i32, i32
  }
  func.func @transform_1(%arg0: i32, %arg1: i32) -> (i32, i32) {
    %c0_i32 = arith.constant 0 : i32
    %c0_i32_0 = arith.constant 0 : i32
    %c0_i32_1 = arith.constant 0 : i32
    return %c0_i32, %c0_i32_0 : i32, i32
  }
  func.func @transform_2(%arg0: i32, %arg1: i32) -> (i32, i32) {
    %c0_i32 = arith.constant 0 : i32
    %c0_i32_0 = arith.constant 0 : i32
    %c0_i32_1 = arith.constant 0 : i32
    return %c0_i32, %c0_i32_0 : i32, i32
  }
  func.func @transform_3(%arg0: i32, %arg1: i32) -> (i32, i32) {
    %c0_i32 = arith.constant 0 : i32
    %c0_i32_0 = arith.constant 0 : i32
    %c0_i32_1 = arith.constant 0 : i32
    return %c0_i32, %c0_i32_0 : i32, i32
  }
  func.func @transform_4(%arg0: i32, %arg1: i32) -> (i32, i32, i32) {
    %c0_i32 = arith.constant 0 : i32
    %c0_i32_0 = arith.constant 0 : i32
    return %arg0, %arg1, %c0_i32 : i32, i32, i32
  }
}

</mosaic_0001>

<llo_original>
// kernel: tpu_custom_call.1
$region0: #{tpu_custom_call.1}
  #allocation0 [shape = 'u32[]', space=smem, size = 0x4, offset = 0x4, fixed_abs, tag = 'smem constant byte address 0x4 - core index']
  #allocation1 [shape = 'u32[144,128]{1,0:T(1,128)}', space=vmem, size = 0x12000, scoped, tag = 'internal scratch']
  %s0 = inlined_call_operand.hbm [shape: f32[2,24,128], index: 0, kind: input, shape index: {}]
  %s1 = inlined_call_operand.hbm [shape: f32[128,128], index: 1, kind: input, shape index: {}]
  %s2 = inlined_call_operand.vmem [shape: f32[1,128], index: 2, kind: input, shape index: {}]
  %s3 = inlined_call_operand.vmem [shape: f32[2,128], index: 3, kind: input, shape index: {}]
  %s4 = inlined_call_operand.hbm [shape: f32[2,24,128], index: 4, kind: output, shape index: {}]
  %s5 = sld [smem:[#allocation0]]
  $region61: #{tpu_custom_call.1} parent=0
    _
  %s7 = ssub.s32 1, %s5
  %s8 = scalar_select 0, %s7, %s5
  $region1: #{tpu_custom_call.1} parent=0
    #allocation2 [shape = 'u8[24576]{0}', space=vmem, size = 0x6000, scoped, tag = 'input window, operand 0']
    #allocation3 [shape = 's32[2]{0}', space=sflag, size = 0x8, scoped, tag = 'scoped memory for tpu_custom_call.1']
    #allocation4 [shape = 's32[2]{0}', space=sflag, size = 0x8, scoped, tag = 'scoped memory for tpu_custom_call.1']
    #allocation5 [shape = 'u8[65536]{0}', space=vmem, size = 0x10000, scoped, tag = 'input window, operand 1, single buffered']
    #allocation6 [shape = 's32[1]{0}', space=sflag, size = 0x4, scoped, tag = 'scoped memory for tpu_custom_call.1']
    #allocation7 [shape = 'u8[24576]{0}', space=vmem, size = 0x6000, scoped, tag = 'output window, operand 0']
    %9 = vsyncpa [#allocation3], 0
    %s10 = scalar_lea.sflag [#allocation3], 1
    %11 = vsyncpa %s10, 0
    %12 = vsyncpa [#allocation6], 0
    %13 = vsyncpa [#allocation4], 0
    %s14 = scalar_lea.sflag [#allocation4], 1
    %15 = vsyncpa %s14, 0
    loop: start=0, step=1, limit=4
    $region2: #{tpu_custom_call.1} parent=1 // loop_pre_header
      _
    $region3: #{tpu_custom_call.1} parent=1 // loop_header
      %s17 = sphi 0, %s21
      %p18 = scmp.ge.s32.totalorder %s17, 4
      %s24 = sphi 0, %s36
      %s25 = sphi 0, %s32
      %s26 = sphi 0, %s24
      %s27 = sphi 0, %s25
      %s28 = sphi 0, %s26
      %s29 = sphi 0, %s27
      %s41 = sphi 0, %s43
      %s44 = sphi 0, %s41
      %s45 = sphi 0, %s44
      %s61 = sphi 0, %s45
      %s65 = sphi 0, %s65
      %s67 = sphi 0, %s65
      %s68 = sphi 0, %s67
      %s82 = sphi 0, %s68
      %s86 = sphi 0, %s86
      %s88 = sphi 0, %s86
      %s89 = sphi 0, %s88
      %s103 = sphi 0, %s89
      %s107 = sphi 0, %s107
      %s109 = sphi 0, %s107
      %s110 = sphi 0, %s109
      %s124 = sphi 0, %s110
      %s132 = sphi 0, %s134
      %s135 = sphi 0, %s132
      %s136 = sphi 0, %s135
      %s152 = sphi 0, %s136
    $region4: #{tpu_custom_call.1} parent=1 // loop_header_branch
      %20 = sbr.rel (%p18) target = $region8
    $region5: #{tpu_custom_call.1} parent=1 // loop_body
      %s22 = ssub.s32 %s17, 1
      %s23 = ssub.s32 %s17, 2
      %s30 = sadd.s32 1, %s25
      %p31 = scmp.ge.s32.totalorder %s30, 1
      %s32 = scalar_select %p31, 0, %s30
      %s33 = sadd.s32 1, %s24
      %s34 = scalar_select %p31, %s33, %s24
      %p35 = scmp.ge.s32.totalorder %s34, 2
      %s36 = scalar_select %p35, 0, %s34
      %s37 = ssub.s32 %s24, %s36
      %s38 = ssub.s32 %s25, %s32
      %s39 = sor.u32 %s37, %s38
      %p40 = scmp.eq.s32.totalorder %s39, 0
      %s42 = sadd.s32 %s41, 1
      %s43 = scalar_select %p40, %s41, %s42
      %p46 = pneg %p40
      %p47 = scmp.eq.s32.totalorder %s17, 1
      %p48 = por %p46, %p47
      %p49 = scmp.ne.s32.totalorder %s41, %s44
      %p50 = scmp.eq.s32.totalorder %s17, 0
      %p51 = por %p49, %p50
      %p52 = scmp.ne.s32.totalorder %s41, %s44
      %p53 = scmp.eq.s32.totalorder %s22, 1
      %p54 = por %p52, %p53
      %p55 = scmp.ne.s32.totalorder %s44, %s45
      %p56 = scmp.eq.s32.totalorder %s22, 0
      %p57 = por %p55, %p56
      %p58 = scmp.ne.s32.totalorder %s44, %s45
      %p59 = scmp.eq.s32.totalorder %s23, 1
      %p60 = por %p58, %p59
      %p62 = scmp.ne.s32.totalorder %s45, %s61
      %p63 = scmp.eq.s32.totalorder %s23, 0
      %p64 = por %p62, %p63
      %s66 = sadd.s32 %s65, 1
      %p69 = scmp.eq.s32.totalorder %s17, 1
      %p70 = scmp.ne.s32.totalorder %s65, %s67
      %p71 = scmp.eq.s32.totalorder %s17, 0
      %p72 = por %p70, %p71
      %p73 = scmp.ne.s32.totalorder %s65, %s67
      %p74 = scmp.eq.s32.totalorder %s22, 1
      %p75 = por %p73, %p74
      %p76 = scmp.ne.s32.totalorder %s67, %s68
      %p77 = scmp.eq.s32.totalorder %s22, 0
      %p78 = por %p76, %p77
      %p79 = scmp.ne.s32.totalorder %s67, %s68
      %p80 = scmp.eq.s32.totalorder %s23, 1
      %p81 = por %p79, %p80
      %p83 = scmp.ne.s32.totalorder %s68, %s82
      %p84 = scmp.eq.s32.totalorder %s23, 0
      %p85 = por %p83, %p84
      %s87 = sadd.s32 %s86, 1
      %p90 = scmp.eq.s32.totalorder %s17, 1
      %p91 = scmp.ne.s32.totalorder %s86, %s88
      %p92 = scmp.eq.s32.totalorder %s17, 0
      %p93 = por %p91, %p92
      %p94 = scmp.ne.s32.totalorder %s86, %s88
      %p95 = scmp.eq.s32.totalorder %s22, 1
      %p96 = por %p94, %p95
      %p97 = scmp.ne.s32.totalorder %s88, %s89
      %p98 = scmp.eq.s32.totalorder %s22, 0
      %p99 = por %p97, %p98
      %p100 = scmp.ne.s32.totalorder %s88, %s89
      %p101 = scmp.eq.s32.totalorder %s23, 1
      %p102 = por %p100, %p101
      %p104 = scmp.ne.s32.totalorder %s89, %s103
      %p105 = scmp.eq.s32.totalorder %s23, 0
      %p106 = por %p104, %p105
      %s108 = sadd.s32 %s107, 1
      %p111 = scmp.eq.s32.totalorder %s17, 1
      %p112 = scmp.ne.s32.totalorder %s107, %s109
      %p113 = scmp.eq.s32.totalorder %s17, 0
      %p114 = por %p112, %p113
      %p115 = scmp.ne.s32.totalorder %s107, %s109
      %p116 = scmp.eq.s32.totalorder %s22, 1
      %p117 = por %p115, %p116
      %p118 = scmp.ne.s32.totalorder %s109, %s110
      %p119 = scmp.eq.s32.totalorder %s22, 0
      %p120 = por %p118, %p119
      %p121 = scmp.ne.s32.totalorder %s109, %s110
      %p122 = scmp.eq.s32.totalorder %s23, 1
      %p123 = por %p121, %p122
      %p125 = scmp.ne.s32.totalorder %s110, %s124
      %p126 = scmp.eq.s32.totalorder %s23, 0
      %p127 = por %p125, %p126
      %s128 = ssub.s32 %s24, %s36
      %s129 = ssub.s32 %s25, %s32
      %s130 = sor.u32 %s128, %s129
      %p131 = scmp.eq.s32.totalorder %s130, 0
      %s133 = sadd.s32 %s132, 1
      %s134 = scalar_select %p131, %s132, %s133
      %p137 = pneg %p131
      %p138 = scmp.eq.s32.totalorder %s17, 1
      %p139 = por %p137, %p138
      %p140 = scmp.ne.s32.totalorder %s132, %s135
      %p141 = scmp.eq.s32.totalorder %s17, 0
      %p142 = por %p140, %p141
      %p143 = scmp.ne.s32.totalorder %s132, %s135
      %p144 = scmp.eq.s32.totalorder %s22, 1
      %p145 = por %p143, %p144
      %p146 = scmp.ne.s32.totalorder %s135, %s136
      %p147 = scmp.eq.s32.totalorder %s22, 0
      %p148 = por %p146, %p147
      %p149 = scmp.ne.s32.totalorder %s135, %s136
      %p150 = scmp.eq.s32.totalorder %s23, 1
      %p151 = por %p149, %p150
      %p153 = scmp.ne.s32.totalorder %s136, %s152
      %p154 = scmp.eq.s32.totalorder %s23, 0
      %p155 = por %p153, %p154
      %p156 = scmp.le.s32.totalorder 1, %s17
      %p157 = scmp.lt.s32.totalorder %s17, 3
      %p158 = pnand %p156, %p157
      %p159 = pneg %p158
      // Predicated region
      $region9: #{tpu_custom_call.1} parent=5 // pred_check
        _
      $region10: #{tpu_custom_call.1} parent=5 // pred_check_branch
        %161 = sbr.rel (%p158) target = $region12
      $region11: #{tpu_custom_call.1} parent=5 // pred_region
        %s162 = ssub.s32 %s17, 1
        // Predicated region
        $region13: #{tpu_custom_call.1} parent=11 // pred_check
          %p163 = pneg %p78
        $region14: #{tpu_custom_call.1} parent=11 // pred_check_branch
          %165 = sbr.rel (%p163) target = $region16
        $region15: #{tpu_custom_call.1} parent=11 // pred_region
          %s167 = ssub.s32 2048, 2048
          %168 = vsyncadd [#allocation6], %s167
          %s169 = sshll.u32 [#allocation5], 4
          %s170 = int_to_ptr.vmem [resolvable:$true] %s169
          %175 = dma.hbm_to_vmem [thread:$0]  %s1, 2048, %s170, [#allocation6], 128, 128, 8
        $region16: #{tpu_custom_call.1} parent=11 // pred_fallthru
          _
        // Predicated region
        $region17: #{tpu_custom_call.1} parent=11 // pred_check
          %p176 = pneg %p99
        $region18: #{tpu_custom_call.1} parent=11 // pred_check_branch
          %178 = sbr.rel (%p176) target = $region20
        $region19: #{tpu_custom_call.1} parent=11 // pred_region
          _
        $region20: #{tpu_custom_call.1} parent=11 // pred_fallthru
          _
        // Predicated region
        $region21: #{tpu_custom_call.1} parent=11 // pred_check
          %p179 = pneg %p120
        $region22: #{tpu_custom_call.1} parent=11 // pred_check_branch
          %181 = sbr.rel (%p179) target = $region24
        $region23: #{tpu_custom_call.1} parent=11 // pred_region
          _
        $region24: #{tpu_custom_call.1} parent=11 // pred_fallthru
          _
      $region12: #{tpu_custom_call.1} parent=5 // pred_fallthru
        _
      %p182 = scmp.lt.s32.totalorder %s17, 2
      // Predicated region
      $region25: #{tpu_custom_call.1} parent=5 // pred_check
        %p183 = pneg %p182
      $region26: #{tpu_custom_call.1} parent=5 // pred_check_branch
        %185 = sbr.rel (%p183) target = $region28
      $region27: #{tpu_custom_call.1} parent=5 // pred_region
        // Predicated region
        $region29: #{tpu_custom_call.1} parent=27 // pred_check
          %p186 = pneg %p51
        $region30: #{tpu_custom_call.1} parent=27 // pred_check_branch
          %188 = sbr.rel (%p186) target = $region32
        $region31: #{tpu_custom_call.1} parent=27 // pred_region
          %s189 = sand.u32 %s41, 1
          %s190 = scalar_lea.sflag [#allocation3], %s189
          %s191 = sand.u32 %s41, 1
          %s192 = smul.addr %s191, 24
          %s193 = scalar_lea.vmem [#allocation2], %s192
          %s194 = smul.u32 3, %s25
          %s196 = ssub.s32 384, 384
          %197 = vsyncadd %s190, %s196
          %s198 = smul.addr %s24, 3
          %s199 = sadd.s32 %s194, %s198
          %s200 = smul.addr %s199, 128
          %s201 = scalar_lea.hbm %s0, %s200
          %s202 = sshll.u32 %s193, 4
          %s203 = int_to_ptr.vmem [resolvable:$true] %s202
          %208 = dma.hbm_to_vmem [thread:$0]  %s201, 384, %s203, %s190, 128, 128, 8
        $region32: #{tpu_custom_call.1} parent=27 // pred_fallthru
          _
      $region28: #{tpu_custom_call.1} parent=5 // pred_fallthru
        _
      %p209 = scmp.le.s32.totalorder 1, %s17
      %p210 = scmp.lt.s32.totalorder %s17, 3
      %p211 = pnand %p209, %p210
      %p212 = pneg %p211
      // Predicated region
      $region33: #{tpu_custom_call.1} parent=5 // pred_check
        _
      $region34: #{tpu_custom_call.1} parent=5 // pred_check_branch
        %214 = sbr.rel (%p211) target = $region36
      $region35: #{tpu_custom_call.1} parent=5 // pred_region
        %s215 = ssub.s32 %s17, 1
        %s216 = sand.u32 %s44, 1
        %s217 = scalar_lea.sflag [#allocation3], %s216
        %s218 = sand.u32 %s44, 1
        %s219 = smul.addr %s218, 24
        %s220 = scalar_lea.vmem [#allocation2], %s219
        // Predicated region
        $region37: #{tpu_custom_call.1} parent=35 // pred_check
          %p221 = pneg %p57
        $region38: #{tpu_custom_call.1} parent=35 // pred_check_branch
          %223 = sbr.rel (%p221) target = $region40
        $region39: #{tpu_custom_call.1} parent=35 // pred_region
          %224 = dma.done %s217, 384
        $region40: #{tpu_custom_call.1} parent=35 // pred_fallthru
          _
        // Predicated region
        $region41: #{tpu_custom_call.1} parent=35 // pred_check
          %p225 = pneg %p78
        $region42: #{tpu_custom_call.1} parent=35 // pred_check_branch
          %227 = sbr.rel (%p225) target = $region44
        $region43: #{tpu_custom_call.1} parent=35 // pred_region
          %228 = dma.done [#allocation6], 2048
        $region44: #{tpu_custom_call.1} parent=35 // pred_fallthru
          _
        %s229 = sand.u32 %s44, 1
        %s230 = scalar_lea.sflag [#allocation3], %s229
        %s231 = sand.u32 %s44, 1
        %s232 = smul.addr %s231, 24
        %s233 = scalar_lea.vmem [#allocation2], %s232
        %p234 = pneg %p57
        %p235 = pneg %p54
        %p236 = pneg %p78
        %p237 = pneg %p75
        %p238 = pneg %p99
        %p239 = pneg %p96
        %p240 = pneg %p120
        %p241 = pneg %p117
        %p242 = pneg %p148
        %p243 = pneg %p145
        %s244 = sand.u32 %s135, 1
        %s245 = scalar_lea.sflag [#allocation4], %s244
        %s246 = sand.u32 %s135, 1
        %s247 = smul.addr %s246, 24
        %s248 = scalar_lea.vmem [#allocation7], %s247
        %s249 = smul.u32 3, %s27
        %s250 = smul.u32 3, %s27
        %v251 = vld [vmem:[%s220] sm:$0xff]
        %v252 = vld [vmem:[%s220 + $0x8] sm:$0xff]
        %v253 = vld [vmem:[%s220 + $0x10] sm:$0xff]
        %v254 = vld [vmem:[#allocation5] sm:$0xff]
        %v255 = vld [vmem:[#allocation5 + $0x8] sm:$0xff]
        %v256 = vld [vmem:[#allocation5 + $0x10] sm:$0xff]
        %v257 = vld [vmem:[#allocation5 + $0x18] sm:$0xff]
        %v258 = vld [vmem:[#allocation5 + $0x20] sm:$0xff]
        %v259 = vld [vmem:[#allocation5 + $0x28] sm:$0xff]
        %v260 = vld [vmem:[#allocation5 + $0x30] sm:$0xff]
        %v261 = vld [vmem:[#allocation5 + $0x38] sm:$0xff]
        %v262 = vld [vmem:[#allocation5 + $0x40] sm:$0xff]
        %v263 = vld [vmem:[#allocation5 + $0x48] sm:$0xff]
        %v264 = vld [vmem:[#allocation5 + $0x50] sm:$0xff]
        %v265 = vld [vmem:[#allocation5 + $0x58] sm:$0xff]
        %v266 = vld [vmem:[#allocation5 + $0x60] sm:$0xff]
        %v267 = vld [vmem:[#allocation5 + $0x68] sm:$0xff]
        %v268 = vld [vmem:[#allocation5 + $0x70] sm:$0xff]
        %v269 = vld [vmem:[#allocation5 + $0x78] sm:$0xff]
        %v270 = vld [vmem:[%s2] sm:$0x1]
        %v272 = vlaneseq
        %v273 = vshrl.u32 %v272, 7
        %v274 = vsub.s32 0, %v273
        %v275 = vrot.slane %v270, %v274
        %277 = vmatprep.subr.mxu0 0.0
        %278 = vmatpush1.msra.mxu0 %v254
        %279 = vmatprep.subr.mxu0 0.0
        %280 = vmatpush1.msra.mxu0 %v255
        %281 = vmatprep.subr.mxu0 0.0
        %282 = vmatpush1.msra.mxu0 %v256
        %283 = vmatprep.subr.mxu0 0.0
        %284 = vmatpush1.msra.mxu0 %v257
        %285 = vmatprep.subr.mxu0 0.0
        %286 = vmatpush1.msra.mxu0 %v258
        %287 = vmatprep.subr.mxu0 0.0
        %288 = vmatpush1.msra.mxu0 %v259
        %289 = vmatprep.subr.mxu0 0.0
        %290 = vmatpush1.msra.mxu0 %v260
        %291 = vmatprep.subr.mxu0 0.0
        %292 = vmatpush1.msra.mxu0 %v261
        %293 = vmatprep.subr.mxu0 0.0
        %294 = vmatpush1.msra.mxu0 %v262
        %295 = vmatprep.subr.mxu0 0.0
        %296 = vmatpush1.msra.mxu0 %v263
        %297 = vmatprep.subr.mxu0 0.0
        %298 = vmatpush1.msra.mxu0 %v264
        %299 = vmatprep.subr.mxu0 0.0
        %300 = vmatpush1.msra.mxu0 %v265
        %301 = vmatprep.subr.mxu0 0.0
        %302 = vmatpush1.msra.mxu0 %v266
        %303 = vmatprep.subr.mxu0 0.0
        %304 = vmatpush1.msra.mxu0 %v267
        %305 = vmatprep.subr.mxu0 0.0
        %306 = vmatpush1.msra.mxu0 %v268
        %307 = vmatprep.subr.mxu0 0.0
        %308 = vmatpush1.msra.mxu0 %v269
        %309 = vmatprep.subr.mxu0 0.0
        %310 = vmatpush1.msra.mxu0 0.0
        %311 = vmatprep.subr.mxu0 0.0
        %312 = vmatpush1.msra.mxu0 0.0
        %313 = vmatprep.subr.mxu0 0.0
        %314 = vmatpush1.msra.mxu0 0.0
        %315 = vmatprep.subr.mxu0 0.0
        %316 = vmatpush1.msra.mxu0 0.0
        %317 = vmatprep.subr.mxu0 0.0
        %318 = vmatpush1.msra.mxu0 0.0
        %319 = vmatprep.subr.mxu0 0.0
        %320 = vmatpush1.msra.mxu0 0.0
        %321 = vmatprep.subr.mxu0 0.0
        %322 = vmatpush1.msra.mxu0 0.0
        %323 = vmatprep.subr.mxu0 0.0
        %324 = vmatpush1.msra.mxu0 0.0
        %325 = vmatprep.subr.mxu0 0.0
        %326 = vmatpush1.msra.mxu0 0.0
        %327 = vmatprep.subr.mxu0 0.0
        %328 = vmatpush1.msra.mxu0 0.0
        %329 = vmatprep.subr.mxu0 0.0
        %330 = vmatpush1.msra.mxu0 0.0
        %331 = vmatprep.subr.mxu0 0.0
        %332 = vmatpush1.msra.mxu0 0.0
        %333 = vmatprep.subr.mxu0 0.0
        %334 = vmatpush1.msra.mxu0 0.0
        %335 = vmatprep.subr.mxu0 0.0
        %336 = vmatpush1.msra.mxu0 0.0
        %337 = vmatprep.subr.mxu0 0.0
        %338 = vmatpush1.msra.mxu0 0.0
        %339 = vmatprep.subr.mxu0 0.0
        %340 = vmatpush1.msra.mxu0 0.0
        %341 = vmatprep.mubr.f32.mxu0 0.0
        %342 = vmatmul.mubr.f32.gmra.mrb[0].mxu0 %v251
        %v343 = vpop.f32.mrb[0].mxu0
        %v344 = vadd.f32 %v275, %v343
        %v345 = vpop.f32.mrb[0].mxu0
        %346 = vmatprep.mubr.f32.mxu0 0.0
        %347 = vmatmul.mubr.f32.gmra.mrb[0].mxu0 %v252
        %v348 = vpop.f32.mrb[0].mxu0
        %v349 = vadd.f32 %v275, %v348
        %v350 = vpop.f32.mrb[0].mxu0
        %351 = vmatprep.mubr.f32.mxu0 0.0
        %352 = vmatmul.mubr.f32.gmra.mrb[0].mxu0 %v253
        %v353 = vpop.f32.mrb[0].mxu0
        %v354 = vadd.f32 %v275, %v353
        %v355 = vpop.f32.mrb[0].mxu0
        %356 = vdwg.mxu0
        %357 = vst [vmem:[%s248] sm:$0xff] %v344
        %358 = vst [vmem:[%s248 + $0x8] sm:$0xff] %v349
        %359 = vst [vmem:[%s248 + $0x10] sm:$0xff] %v354
        %p360 = scmp.eq.s32.totalorder %s27, 0
        // Predicated region
        $region45: #{tpu_custom_call.1} parent=35 // pred_check
          %p361 = pneg %p360
        $region46: #{tpu_custom_call.1} parent=35 // pred_check_branch
          %363 = sbr.rel (%p361) target = $region48
        $region47: #{tpu_custom_call.1} parent=35 // pred_region
          %v364 = vld [vmem:[%s3] sm:$0x3]
          %365 = vst [vmem:[%s248] sm:$0x3] %v364
        $region48: #{tpu_custom_call.1} parent=35 // pred_fallthru
          _
        %s366 = sand.u32 %s135, 1
        %s367 = scalar_lea.sflag [#allocation4], %s366
        %s368 = sand.u32 %s135, 1
        %s369 = smul.addr %s368, 24
        %s370 = scalar_lea.vmem [#allocation7], %s369
        // Predicated region
        $region49: #{tpu_custom_call.1} parent=35 // pred_check
          %p371 = pneg %p145
        $region50: #{tpu_custom_call.1} parent=35 // pred_check_branch
          %373 = sbr.rel (%p371) target = $region52
        $region51: #{tpu_custom_call.1} parent=35 // pred_region
          %s374 = smul.u32 3, %s27
          %s376 = ssub.s32 384, 384
          %377 = vsyncadd %s367, %s376
          %s378 = smul.addr %s26, 3
          %s379 = sadd.s32 %s374, %s378
          %s380 = smul.addr %s379, 128
          %s381 = scalar_lea.hbm %s4, %s380
          %s382 = sshll.u32 %s370, 4
          %s383 = int_to_ptr.vmem [resolvable:$true] %s382
          %388 = dma.vmem_to_hbm [thread:$0]  %s383, 384, %s381, %s367, 128, 128, 8
        $region52: #{tpu_custom_call.1} parent=35 // pred_fallthru
          _
      $region36: #{tpu_custom_call.1} parent=5 // pred_fallthru
        _
      %p389 = scmp.le.s32.totalorder 2, %s17
      // Predicated region
      $region53: #{tpu_custom_call.1} parent=5 // pred_check
        %p390 = pneg %p389
      $region54: #{tpu_custom_call.1} parent=5 // pred_check_branch
        %392 = sbr.rel (%p390) target = $region56
      $region55: #{tpu_custom_call.1} parent=5 // pred_region
        %s393 = ssub.s32 %s17, 2
        // Predicated region
        $region57: #{tpu_custom_call.1} parent=55 // pred_check
          %p394 = pneg %p151
        $region58: #{tpu_custom_call.1} parent=55 // pred_check_branch
          %396 = sbr.rel (%p394) target = $region60
        $region59: #{tpu_custom_call.1} parent=55 // pred_region
          %s397 = sand.u32 %s136, 1
          %s398 = scalar_lea.sflag [#allocation4], %s397
          %s399 = sand.u32 %s136, 1
          %s400 = smul.addr %s399, 24
          %s401 = scalar_lea.vmem [#allocation7], %s400
          %402 = dma.done %s398, 384
        $region60: #{tpu_custom_call.1} parent=55 // pred_fallthru
          _
      $region56: #{tpu_custom_call.1} parent=5 // pred_fallthru
        _
    $region6: #{tpu_custom_call.1} parent=1 // loop_footer
      %s21 = sadd.s32 1, %s17
    $region7: #{tpu_custom_call.1} parent=1 // loop_footer_branch
      %16 = sbr.rel target = $region3
    $region8: #{tpu_custom_call.1} parent=1 // loop_exit
      _
    %403 = vsyncpa [#allocation3], 1
    %s404 = scalar_lea.sflag [#allocation3], 1
    %405 = vsyncpa %s404, 1
    %406 = vsyncpa [#allocation6], 1
    %407 = vsyncpa [#allocation4], 1
    %s408 = scalar_lea.sflag [#allocation4], 1
    %409 = vsyncpa %s408, 1

</llo_original>
